<compile_context>
chip_gen: v7x
topology: tpu7x:2x2x1
jax: 0.10.0
libtpu: 0.0.40
codegen_flags: <defaults>
</compile_context>

<pallas_src>
import functools

import jax
import jax.numpy as jnp
from jax import lax
from jax.experimental import pallas as pl
from jax.experimental.pallas import tpu as pltpu


def _label_smoothing_kernel(pred_ref, tgt_ref, out_ref, *,
                            batch, classes, smoothing, block_rows):
    confidence = 1.0 - smoothing
    off_value = smoothing / (classes - 1)
    coeff_target = confidence - off_value       # extra weight on the target class

    pid = pl.program_id(0)
    row0 = pl.multiple_of(pid * block_rows, block_rows)

    pred = pred_ref[...].astype(jnp.float32)                     # (TB, C)
    tgt = tgt_ref[pl.ds(row0, block_rows), :]                    # (TB, 1) int32

    # Stable log-softmax denominator pieces (everything stays (TB, 1)).
    m = jnp.max(pred, axis=-1, keepdims=True)                            # (TB,1)
    lse = jnp.log(jnp.sum(jnp.exp(pred - m), axis=-1, keepdims=True))    # (TB,1)
    denom = m + lse                                                      # (TB,1)

    # Fused weighted sum:  sum_j true_dist_ij * pred_ij,
    # with true_dist_ij = off + coeff_target * [j == t_i].
    col_ids = lax.broadcasted_iota(jnp.int32, pred.shape, dimension=1)
    w = off_value + coeff_target * (col_ids == tgt).astype(jnp.float32)  # (TB,C)
    weighted = jnp.sum(pred * w, axis=-1, keepdims=True)                 # (TB,1)

    # Since sum_j true_dist_ij == 1:  loss_i = denom_i - weighted_i.
    per_row = denom - weighted                                           # (TB,1)

    # Zero out padded rows of a partial last tile (drops any garbage NaN/Inf).
    row_ids = lax.broadcasted_iota(jnp.int32, per_row.shape, dimension=0)
    valid = (row0 + row_ids) < batch
    out_ref[...] = jnp.where(valid, per_row, 0.0)


def label_smoothing_loss(pred, target, *, classes, smoothing=0.0,
                         block_rows=None):
    """pred: (B, C) float logits (f32 or bf16); target: (B,) int class indices."""
    B, C = pred.shape
    assert C == classes
    assert classes >= 2, "smoothing/(classes-1) requires classes >= 2"
    bytes_per_elem = jnp.dtype(pred.dtype).itemsize

    # Generation-aware tile budget / VMEM limit.
    try:
        info = pltpu.get_tpu_info()
        phys_vmem = int(getattr(info, "vmem_capacity_bytes", 64 * 1024 * 1024))
    except Exception:
        phys_vmem = 64 * 1024 * 1024
    if phys_vmem >= 128 * 1024 * 1024:          # v5e / v6e: 128 MiB physical
        tile_budget = 16 * 1024 * 1024
        vmem_limit = 64 * 1024 * 1024
    else:                                        # v7x: 64 MiB physical per TC
        tile_budget = 8 * 1024 * 1024
        vmem_limit = 32 * 1024 * 1024

    # Batch tile: biggest double-buffered pred tile under budget, sublane
    # aligned (multiple of 8) unless one tile covers the whole batch.
    if block_rows is None:
        rows = max(8, tile_budget // max(1, 2 * C * bytes_per_elem))
        block_rows = B if rows >= B else max(8, (rows // 8) * 8)
    tb = min(block_rows, B)
    if tb < B:
        tb = max(8, (tb // 8) * 8)
    n_tiles = pl.cdiv(B, tb)
    padded_B = n_tiles * tb

    target2d = target.astype(jnp.int32).reshape(B, 1)
    if padded_B != B:
        target2d = jnp.pad(target2d, ((0, padded_B - B), (0, 0)))

    kernel = functools.partial(
        _label_smoothing_kernel,
        batch=B, classes=classes, smoothing=float(smoothing), block_rows=tb,
    )

    cost = pl.CostEstimate(
        flops=int(6 * B * C),
        transcendentals=int(B * C + B),
        bytes_accessed=int(bytes_per_elem * B * C + 4 * B + 4 * padded_B),
    )

    per_row = pl.pallas_call(
        kernel,
        out_shape=jax.ShapeDtypeStruct((padded_B, 1), jnp.float32),
        grid_spec=pltpu.PrefetchScalarGridSpec(
            num_scalar_prefetch=0,
            grid=(n_tiles,),
            in_specs=[
                # pred: (tb, C) tiles, auto double-buffered / pipelined.
                pl.BlockSpec((tb, C), lambda i: (i, 0)),
                # targets: whole array VMEM-resident (constant block index),
                # sliced in-kernel with pl.ds -> no per-step tiny DMA.
                pl.BlockSpec((padded_B, 1), lambda i: (0, 0)),
            ],
            out_specs=pl.BlockSpec((tb, 1), lambda i: (i, 0)),
        ),
        compiler_params=pltpu.CompilerParams(
            dimension_semantics=("parallel",),   # per-tile outputs -> both TCs on v7x
            vmem_limit_bytes=vmem_limit,
        ),
        cost_estimate=cost,
    )(pred, target2d)

    # Padded rows are exact zeros; mean over the true batch size.
    return jnp.sum(per_row) * jnp.float32(1.0 / B)


def _reference(pred, target, classes, smoothing):
    confidence = 1.0 - smoothing
    logp = jax.nn.log_softmax(pred.astype(jnp.float32), axis=-1)
    true_dist = jnp.full_like(logp, smoothing / (classes - 1))
    true_dist = true_dist.at[jnp.arange(pred.shape[0]), target].set(confidence)
    return jnp.mean(jnp.sum(-true_dist * logp, axis=-1))


if __name__ == "__main__":
    key = jax.random.PRNGKey(0)
    C = 10               # CIFAR-10 classes
    smoothing = 0.1
    k1, k2, k3, k4 = jax.random.split(key, 4)

    # Case 1: default tiling -> single tile covering the whole batch.
    B1 = 32
    pred1 = jax.random.normal(k1, (B1, C), dtype=jnp.float32)
    tgt1 = jax.random.randint(k2, (B1,), 0, C, dtype=jnp.int32)
    loss1 = jax.block_until_ready(
        label_smoothing_loss(pred1, tgt1, classes=C, smoothing=smoothing))
    ref1 = _reference(pred1, tgt1, C, smoothing)
    assert jnp.allclose(loss1, ref1, atol=1e-5, rtol=1e-5), (loss1, ref1)

    # Case 2: forced multi-tile grid (4 tiles of 8 rows), parallel batch axis.
    loss2 = jax.block_until_ready(
        label_smoothing_loss(pred1, tgt1, classes=C, smoothing=smoothing,
                             block_rows=8))
    assert jnp.allclose(loss2, ref1, atol=1e-5, rtol=1e-5), (loss2, ref1)

    # Case 3: batch NOT divisible by the tile -> padded last tile is masked.
    B3 = 20
    pred3 = jax.random.normal(k3, (B3, C), dtype=jnp.float32)
    tgt3 = jax.random.randint(k4, (B3,), 0, C, dtype=jnp.int32)
    loss3 = jax.block_until_ready(
        label_smoothing_loss(pred3, tgt3, classes=C, smoothing=smoothing,
                             block_rows=8))
    ref3 = _reference(pred3, tgt3, C, smoothing)
    assert jnp.allclose(loss3, ref3, atol=1e-5, rtol=1e-5), (loss3, ref3)

    print("KERNEL_OK")
</pallas_src>

<mosaic_0001>
module attributes {stable_mosaic.version = 11 : i64} {
  func.func @_label_smoothing_kernel(%arg0: i32, %arg1: memref<32x10xf32, #tpu.memory_space<vmem>>, %arg2: memref<32x1xi32, #tpu.memory_space<vmem>>, %arg3: memref<32x1xf32, #tpu.memory_space<vmem>>) attributes {dimension_semantics = [#tpu.dimension_semantics<parallel>], iteration_bounds = array<i64: 1>, scalar_prefetch = 0 : i64, scratch_operands = 0 : i64, tpu.core_type = #tpu.core_type<tc>, window_params = [{transform_indices = @transform_0, window_bounds = array<i64: 32, 10>}, {pipeline_mode = #tpu.pipeline_mode<synchronous>, transform_indices = @transform_1, window_bounds = array<i64: 32, 1>}, {transform_indices = @transform_2, window_bounds = array<i64: 32, 1>}]} {
    %c32_i32 = arith.constant 32 : i32
    %0 = arith.muli %arg0, %c32_i32 : i32
    %1 = tpu.assume_multiple %0, 32 : i32
    %c0 = arith.constant 0 : index
    %c0_0 = arith.constant 0 : index
    %2 = vector.load %arg1[%c0, %c0_0] : memref<32x10xf32, #tpu.memory_space<vmem>>, vector<32x10xf32>
    %3 = arith.index_cast %1 : i32 to index
    %c0_1 = arith.constant 0 : index
    %4 = vector.load %arg2[%3, %c0_1] : memref<32x1xi32, #tpu.memory_space<vmem>>, vector<32x1xi32>
    %cst = arith.constant dense<0xFF800000> : vector<32xf32>
    %5 = vector.multi_reduction <maximumf>, %2, %cst [1] : vector<32x10xf32> to vector<32xf32>
    %6 = vector.shape_cast %5 : vector<32xf32> to vector<32x1xf32>
    %7 = vector.broadcast %6 : vector<32x1xf32> to vector<32x10xf32>
    %8 = arith.subf %2, %7 : vector<32x10xf32>
    %9 = math.exp %8 : vector<32x10xf32>
    %cst_2 = arith.constant dense<0.000000e+00> : vector<32xf32>
    %10 = vector.multi_reduction <add>, %9, %cst_2 [1] : vector<32x10xf32> to vector<32xf32>
    %11 = vector.shape_cast %10 : vector<32xf32> to vector<32x1xf32>
    %12 = math.log %11 : vector<32x1xf32>
    %13 = arith.addf %6, %12 : vector<32x1xf32>
    %14 = tpu.iota {dimensions = array<i32: 1>} : vector<32x10xi32>
    %15 = vector.broadcast %4 : vector<32x1xi32> to vector<32x10xi32>
    %16 = arith.cmpi eq, %14, %15 : vector<32x10xi32>
    %17 = arith.extui %16 : vector<32x10xi1> to vector<32x10xi32>
    %18 = arith.sitofp %17 : vector<32x10xi32> to vector<32x10xf32>
    %cst_3 = arith.constant 0.888888895 : f32
    %19 = vector.broadcast %cst_3 : f32 to vector<32x10xf32>
    %20 = arith.mulf %19, %18 : vector<32x10xf32>
    %cst_4 = arith.constant 0.0111111114 : f32
    %21 = vector.broadcast %cst_4 : f32 to vector<32x10xf32>
    %22 = arith.addf %21, %20 : vector<32x10xf32>
    %23 = arith.mulf %2, %22 : vector<32x10xf32>
    %cst_5 = arith.constant dense<0.000000e+00> : vector<32xf32>
    %24 = vector.multi_reduction <add>, %23, %cst_5 [1] : vector<32x10xf32> to vector<32xf32>
    %25 = vector.shape_cast %24 : vector<32xf32> to vector<32x1xf32>
    %26 = arith.subf %13, %25 : vector<32x1xf32>
    %27 = tpu.iota {dimensions = array<i32: 0>} : vector<32x1xi32>
    %28 = vector.broadcast %1 : i32 to vector<32x1xi32>
    %29 = arith.addi %28, %27 : vector<32x1xi32>
    %c32_i32_6 = arith.constant 32 : i32
    %30 = vector.broadcast %c32_i32_6 : i32 to vector<32x1xi32>
    %31 = arith.cmpi slt, %29, %30 : vector<32x1xi32>
    %cst_7 = arith.constant 0.000000e+00 : f32
    %32 = vector.broadcast %cst_7 : f32 to vector<32x1xf32>
    %33 = arith.select %31, %26, %32 : vector<32x1xi1>, vector<32x1xf32>
    %c0_8 = arith.constant 0 : index
    %c0_9 = arith.constant 0 : index
    %34 = vector.load %arg3[%c0_8, %c0_9] : memref<32x1xf32, #tpu.memory_space<vmem>>, vector<32x1xf32>
    tpu.vector_store %arg3[%c0_8, %c0_9], %33 {strides = array<i32>} : memref<32x1xf32, #tpu.memory_space<vmem>>, vector<32x1xf32>,
    return
  }
  func.func @transform_0(%arg0: i32) -> (i32, i32) {
    %c0_i32 = arith.constant 0 : i32
    %c0_i32_0 = arith.constant 0 : i32
    return %arg0, %c0_i32 : i32, i32
  }
  func.func @transform_1(%arg0: i32) -> (i32, i32) {
    %c0_i32 = arith.constant 0 : i32
    %c0_i32_0 = arith.constant 0 : i32
    %c0_i32_1 = arith.constant 0 : i32
    return %c0_i32, %c0_i32_0 : i32, i32
  }
  func.func @transform_2(%arg0: i32) -> (i32, i32) {
    %c0_i32 = arith.constant 0 : i32
    %c0_i32_0 = arith.constant 0 : i32
    return %arg0, %c0_i32 : i32, i32
  }
}

</mosaic_0001>

<llo_original>
// kernel: tpu_custom_call.1
$region0: #{tpu_custom_call.1}
  #allocation0 [shape = 'u32[]', space=smem, size = 0x4, offset = 0x4, fixed_abs, tag = 'smem constant byte address 0x4 - core index']
  #allocation1 [shape = 'u32[144,128]{1,0:T(1,128)}', space=vmem, size = 0x12000, scoped, tag = 'internal scratch']
  %s0 = inlined_call_operand.vmem [shape: f32[32,10], index: 0, kind: input, shape index: {}]
  %s1 = inlined_call_operand.vmem [shape: s32[32,1], index: 1, kind: input, shape index: {}]
  %s2 = inlined_call_operand.vmem [shape: f32[32,1], index: 2, kind: output, shape index: {}]
  %s3 = sld [smem:[#allocation0]]
  $region18: #{tpu_custom_call.1} parent=0
    _
  %s5 = ssub.s32 1, %s3
  %s6 = scalar_select 0, %s5, %s3
  // Predicated region
  $region2: #{tpu_custom_call.1} parent=0 // pred_check
    _
  $region3: #{tpu_custom_call.1} parent=0 // pred_check_branch
    %8 = sbr.rel (0) target = $region5
  $region4: #{tpu_custom_call.1} parent=0 // pred_region
    _
  $region5: #{tpu_custom_call.1} parent=0 // pred_fallthru
    _
  // Predicated region
  $region6: #{tpu_custom_call.1} parent=0 // pred_check
    _
  $region7: #{tpu_custom_call.1} parent=0 // pred_check_branch
    %10 = sbr.rel (0) target = $region9
  $region8: #{tpu_custom_call.1} parent=0 // pred_region
    _
  $region9: #{tpu_custom_call.1} parent=0 // pred_fallthru
    _
  %s11 = smul.u32 0, 32
  %v12 = vld [vmem:[%s0] sm:$0xff]
  %v13 = vld [vmem:[%s0 + $0x8] sm:$0xff]
  %v14 = vld [vmem:[%s0 + $0x10] sm:$0xff]
  %v15 = vld [vmem:[%s0 + $0x18] sm:$0xff]
  %s16 = scalar_lea.vmem %s1, %s11
  %v17 = vld [vmem:[%s16] sm:$0xff]
  %v18 = vld [vmem:[%s16 + $0x8] sm:$0xff]
  %v19 = vld [vmem:[%s16 + $0x10] sm:$0xff]
  %v20 = vld [vmem:[%s16 + $0x18] sm:$0xff]
  %vm21 = vcmask 80896
  %v22 = vsel %vm21, %v12, -inf
  %23 = vmax.xlane.f32.xlu0 %v22
  %v24 = vpop.xlane.xlu0 %23
  %v25 = vsel %vm21, %v13, -inf
  %26 = vmax.xlane.f32.xlu0 %v25
  %v27 = vpop.xlane.xlu0 %26
  %v28 = vsel %vm21, %v14, -inf
  %29 = vmax.xlane.f32.xlu0 %v28
  %v30 = vpop.xlane.xlu0 %29
  %v31 = vsel %vm21, %v15, -inf
  %32 = vmax.xlane.f32.xlu0 %v31
  %v33 = vpop.xlane.xlu0 %32
  %v34 = vsub.f32 %v12, %v24
  %v35 = vsub.f32 %v13, %v27
  %v36 = vsub.f32 %v14, %v30
  %v37 = vsub.f32 %v15, %v33
  %v38 = vmul.f32 %v34, 1.442695
  %v39 = vpow.pop %v38
  %v40 = vmul.f32 %v35, 1.442695
  %v41 = vpow.pop %v40
  %v42 = vmul.f32 %v36, 1.442695
  %v43 = vpow.pop %v42
  %v44 = vmul.f32 %v37, 1.442695
  %v45 = vpow.pop %v44
  %v46 = vsel %vm21, %v39, 0.0
  %47 = vadd.xlane.f32.xlu0 %v46
  %v48 = vpop.xlane.xlu0 %47
  %v49 = vsel %vm21, %v41, 0.0
  %50 = vadd.xlane.f32.xlu0 %v49
  %v51 = vpop.xlane.xlu0 %50
  %v52 = vsel %vm21, %v43, 0.0
  %53 = vadd.xlane.f32.xlu0 %v52
  %v54 = vpop.xlane.xlu0 %53
  %v55 = vsel %vm21, %v45, 0.0
  %56 = vadd.xlane.f32.xlu0 %v55
  %v57 = vpop.xlane.xlu0 %56
  %v58 = vlog2.pop %v48
  %v59 = vmul.f32 %v58, 0.6931472
  %v60 = vlog2.pop %v51
  %v61 = vmul.f32 %v60, 0.6931472
  %v62 = vlog2.pop %v54
  %v63 = vmul.f32 %v62, 0.6931472
  %v64 = vlog2.pop %v57
  %v65 = vmul.f32 %v64, 0.6931472
  %v66 = vadd.f32 %v24, %v59
  %v67 = vadd.f32 %v27, %v61
  %v68 = vadd.f32 %v30, %v63
  %v69 = vadd.f32 %v33, %v65
  %v70 = vlaneseq
  %v71 = vand.u32 %v70, 127
  %72 = vset.pattern.permute.xlu0 0
  %73 = vperm.xlu0 %72, %v17
  %v74 = vpop.permute.xlu0 %73
  %75 = vset.pattern.permute.xlu0 0
  %76 = vperm.xlu0 %75, %v18
  %v77 = vpop.permute.xlu0 %76
  %78 = vset.pattern.permute.xlu0 0
  %79 = vperm.xlu0 %78, %v19
  %v80 = vpop.permute.xlu0 %79
  %81 = vset.pattern.permute.xlu0 0
  %82 = vperm.xlu0 %81, %v20
  %v83 = vpop.permute.xlu0 %82
  %vm84 = vcmp.eq.s32.totalorder %v71, %v74
  %vm85 = vcmp.eq.s32.totalorder %v71, %v77
  %vm86 = vcmp.eq.s32.totalorder %v71, %v80
  %vm87 = vcmp.eq.s32.totalorder %v71, %v83
  %v88 = vsel %vm84, 1, 0
  %v89 = vsel %vm85, 1, 0
  %v90 = vsel %vm86, 1, 0
  %v91 = vsel %vm87, 1, 0
  %v92 = vcvt.s32.f32 %v88
  %v93 = vcvt.s32.f32 %v89
  %v94 = vcvt.s32.f32 %v90
  %v95 = vcvt.s32.f32 %v91
  %v96 = vmul.f32 %v92, 0.8888889
  %v97 = vmul.f32 %v93, 0.8888889
  %v98 = vmul.f32 %v94, 0.8888889
  %v99 = vmul.f32 %v95, 0.8888889
  %v100 = vadd.f32 %v96, 0.011111111
  %v101 = vadd.f32 %v97, 0.011111111
  %v102 = vadd.f32 %v98, 0.011111111
  %v103 = vadd.f32 %v99, 0.011111111
  %v104 = vmul.f32 %v12, %v100
  %v105 = vmul.f32 %v13, %v101
  %v106 = vmul.f32 %v14, %v102
  %v107 = vmul.f32 %v15, %v103
  %v108 = vsel %vm21, %v104, 0.0
  %109 = vadd.xlane.f32.xlu0 %v108
  %v110 = vpop.xlane.xlu0 %109
  %v111 = vsel %vm21, %v105, 0.0
  %112 = vadd.xlane.f32.xlu0 %v111
  %v113 = vpop.xlane.xlu0 %112
  %v114 = vsel %vm21, %v106, 0.0
  %115 = vadd.xlane.f32.xlu0 %v114
  %v116 = vpop.xlane.xlu0 %115
  %v117 = vsel %vm21, %v107, 0.0
  %118 = vadd.xlane.f32.xlu0 %v117
  %v119 = vpop.xlane.xlu0 %118
  %v120 = vsub.f32 %v66, %v110
  %v121 = vsub.f32 %v67, %v113
  %v122 = vsub.f32 %v68, %v116
  %v123 = vsub.f32 %v69, %v119
  %v124 = vlaneseq
  %v125 = vshrl.u32 %v124, 7
  %v126 = vadd.s32 %v125, 8
  %v127 = vadd.s32 %v125, 16
  %v128 = vadd.s32 %v125, 24
  %v129 = vstv %s11
  %v130 = vadd.s32 %v129, %v125
  %v131 = vadd.s32 %v129, %v126
  %v132 = vadd.s32 %v129, %v127
  %v133 = vadd.s32 %v129, %v128
  %vm134 = vcmp.lt.s32.totalorder %v130, 32
  %vm135 = vcmp.lt.s32.totalorder %v131, 32
  %vm136 = vcmp.lt.s32.totalorder %v132, 32
  %vm137 = vcmp.lt.s32.totalorder %v133, 32
  %v138 = vsel %vm134, %v120, 0.0
  %v139 = vsel %vm135, %v121, 0.0
  %v140 = vsel %vm136, %v122, 0.0
  %v141 = vsel %vm137, %v123, 0.0
  %vm142 = vcmask 7168
  %143 = vst.msk [vmem:[%s2] sm:$0xff] %vm142, %v138
  %144 = vst.msk [vmem:[%s2 + $0x8] sm:$0xff] %vm142, %v139
  %145 = vst.msk [vmem:[%s2 + $0x10] sm:$0xff] %vm142, %v140
  %146 = vst.msk [vmem:[%s2 + $0x18] sm:$0xff] %vm142, %v141
  // Predicated region
  $region10: #{tpu_custom_call.1} parent=0 // pred_check
    _
  $region11: #{tpu_custom_call.1} parent=0 // pred_check_branch
    %148 = sbr.rel (0) target = $region13
  $region12: #{tpu_custom_call.1} parent=0 // pred_region
    _
  $region13: #{tpu_custom_call.1} parent=0 // pred_fallthru
    _
  // Predicated region
  $region14: #{tpu_custom_call.1} parent=0 // pred_check
    _
  $region15: #{tpu_custom_call.1} parent=0 // pred_check_branch
    %150 = sbr.rel (0) target = $region17
  $region16: #{tpu_custom_call.1} parent=0 // pred_region
    _
  $region17: #{tpu_custom_call.1} parent=0 // pred_fallthru
    _

</llo_original>
